<compile_context>
chip_gen: v6e
topology: v6e:2x2x1
jax: 0.10.0
libtpu: 0.0.40
codegen_flags: <defaults>
</compile_context>

<pallas_src>
import jax
import jax.numpy as jnp
from jax.experimental import pallas as pl
from jax.experimental.pallas import tpu as pltpu


LANE = 128
SUBLANE = 8
# Candidate lane widths (multiples of 128, widest first -> fewer, fatter DMAs
# and unmasked full-width vector stores).
_LANE_CANDIDATES = (4096, 2048, 1024, 512, 256, 128)
# ~2 MiB per block: with double-buffered input + output that is ~8 MiB of VMEM,
# comfortably inside v5e's 16 MiB scoped default (and far below v6e/v7x
# limits), while large enough to sit near the HBM roofline for a mem-bound op.
_TARGET_BLOCK_BYTES = 2 * 1024 * 1024


def relu_kernel(x_ref, o_ref):
    # Matches the Triton relu_kernel exactly: tl.where(x >= 0, x, 0).
    # (Note: this maps NaN -> 0 like the reference Triton kernel;
    #  jnp.maximum(x, 0) would instead propagate NaN like torch.relu.)
    x = x_ref[...]
    zero = jnp.zeros((), dtype=x.dtype)
    o_ref[...] = jnp.where(x >= zero, x, zero)


def relu_triton_forward(x: jnp.ndarray) -> jnp.ndarray:
    """Forward of ReLUTriton: elementwise ReLU, any shape/dtype preserved."""
    orig_shape = x.shape
    dtype = x.dtype
    n = x.size
    itemsize = jnp.dtype(dtype).itemsize

    # Pick the widest lane count that divides n exactly (no HBM pad/slice pass).
    lanes = None
    for cand in _LANE_CANDIDATES:
        if n % cand == 0:
            lanes = cand
            break

    flat = x.reshape((n,))
    padded = False
    if lanes is None:
        # Ragged element count (rare for conv activations): pad the tail.
        # relu(0) == 0, so zero padding is safe; trailing slice restores shape.
        lanes = LANE
        n_pad = pl.cdiv(n, lanes) * lanes
        flat = jnp.pad(flat, (0, n_pad - n))
        padded = True
    else:
        n_pad = n

    rows = n_pad // lanes
    x2d = flat.reshape((rows, lanes))

    # Row-tile sized to ~_TARGET_BLOCK_BYTES, rounded down to a sublane multiple.
    max_block_rows = max(
        SUBLANE,
        (_TARGET_BLOCK_BYTES // (lanes * itemsize)) // SUBLANE * SUBLANE,
    )
    if rows <= max_block_rows:
        block_rows = rows  # single block; full-extent block dims are always legal
    else:
        block_rows = max_block_rows  # multiple of 8; Pallas masks a partial last block

    grid = (pl.cdiv(rows, block_rows),)

    out2d = pl.pallas_call(
        relu_kernel,
        out_shape=jax.ShapeDtypeStruct((rows, lanes), dtype),
        grid_spec=pltpu.PrefetchScalarGridSpec(
            num_scalar_prefetch=0,
            grid=grid,
            in_specs=[pl.BlockSpec((block_rows, lanes), lambda i: (i, 0))],
            out_specs=pl.BlockSpec((block_rows, lanes), lambda i: (i, 0)),
        ),
        compiler_params=pltpu.CompilerParams(
            # Lets v7x shard the single grid axis across its 2 TensorCores;
            # no-op on v5e/v6e.
            dimension_semantics=("parallel",),
        ),
    )(x2d)

    out_flat = out2d.reshape((n_pad,))
    if padded:
        out_flat = out_flat[:n]
    return out_flat.reshape(orig_shape)


def _relu_ref(x):
    # Same semantics as the Triton kernel (NaN -> 0).
    return jnp.where(x >= 0, x, jnp.zeros((), dtype=x.dtype))


if __name__ == "__main__":
    key = jax.random.PRNGKey(0)

    # Small NCHW input consistent with the module's usage inside AlexNet.
    x = jax.random.normal(key, (2, 4, 16, 16), dtype=jnp.float32)
    y = relu_triton_forward(x)
    jax.block_until_ready(y)
    assert y.shape == x.shape and y.dtype == x.dtype
    assert jnp.allclose(y, _relu_ref(x)), "ReLU kernel mismatch (small NCHW)"

    # Ragged element count -> exercises the pad fallback path.
    xr = jax.random.normal(jax.random.PRNGKey(1), (3, 5, 7), dtype=jnp.float32)
    yr = relu_triton_forward(xr)
    jax.block_until_ready(yr)
    assert jnp.allclose(yr, _relu_ref(xr)), "ReLU kernel mismatch (ragged)"

    # Larger activation -> exercises the multi-block grid (incl. partial last block).
    xl = jax.random.normal(jax.random.PRNGKey(2), (16, 64, 56, 56), dtype=jnp.float32)
    yl = relu_triton_forward(xl)
    jax.block_until_ready(yl)
    assert jnp.allclose(yl, _relu_ref(xl)), "ReLU kernel mismatch (large)"

    print("KERNEL_OK")
</pallas_src>

<mosaic_0001>
module attributes {stable_mosaic.version = 11 : i64} {
  func.func @relu_kernel(%arg0: i32, %arg1: memref<1x2048xf32, #tpu.memory_space<vmem>>, %arg2: memref<1x2048xf32, #tpu.memory_space<vmem>>) attributes {dimension_semantics = [#tpu.dimension_semantics<parallel>], iteration_bounds = array<i64: 1>, scalar_prefetch = 0 : i64, scratch_operands = 0 : i64, tpu.core_type = #tpu.core_type<tc>, window_params = [{transform_indices = @transform_0, window_bounds = array<i64: 1, 2048>}, {transform_indices = @transform_1, window_bounds = array<i64: 1, 2048>}]} {
    %c0 = arith.constant 0 : index
    %c0_0 = arith.constant 0 : index
    %0 = vector.load %arg1[%c0, %c0_0] : memref<1x2048xf32, #tpu.memory_space<vmem>>, vector<1x2048xf32>
    %cst = arith.constant 0.000000e+00 : f32
    %1 = vector.broadcast %cst : f32 to vector<1x2048xf32>
    %2 = arith.cmpf oge, %0, %1 : vector<1x2048xf32>
    %cst_1 = arith.constant 0.000000e+00 : f32
    %3 = vector.broadcast %cst_1 : f32 to vector<1x2048xf32>
    %4 = arith.select %2, %0, %3 : vector<1x2048xi1>, vector<1x2048xf32>
    %c0_2 = arith.constant 0 : index
    %c0_3 = arith.constant 0 : index
    %5 = vector.load %arg2[%c0_2, %c0_3] : memref<1x2048xf32, #tpu.memory_space<vmem>>, vector<1x2048xf32>
    tpu.vector_store %arg2[%c0_2, %c0_3], %4 {strides = array<i32>} : memref<1x2048xf32, #tpu.memory_space<vmem>>, vector<1x2048xf32>,
    return
  }
  func.func @transform_0(%arg0: i32) -> (i32, i32) {
    %c0_i32 = arith.constant 0 : i32
    %c0_i32_0 = arith.constant 0 : i32
    return %arg0, %c0_i32 : i32, i32
  }
  func.func @transform_1(%arg0: i32) -> (i32, i32) {
    %c0_i32 = arith.constant 0 : i32
    %c0_i32_0 = arith.constant 0 : i32
    return %arg0, %c0_i32 : i32, i32
  }
}

</mosaic_0001>

<llo_original>
// kernel: tpu_custom_call.1
$region0: #{tpu_custom_call.1}
  #allocation0 [shape = 'u32[]', space=smem, size = 0x4, offset = 0x4, fixed_abs, tag = 'smem constant byte address 0x4 - core index']
  #allocation1 [shape = 'u32[144,128]{1,0:T(1,128)}', space=vmem, size = 0x12000, scoped, tag = 'internal scratch']
  %s0 = inlined_call_operand.hbm [shape: f32[1,2048], index: 0, kind: input, shape index: {}]
  %s1 = inlined_call_operand.hbm [shape: f32[1,2048], index: 1, kind: output, shape index: {}]
  %s2 = sld [smem:[#allocation0]]
  $region18: #{tpu_custom_call.1} parent=0
    _
  %s4 = ssub.s32 1, %s2
  %s5 = scalar_select 0, %s4, %s2
  $region1: #{tpu_custom_call.1} parent=0
    #allocation2 [shape = 'u8[8192]{0}', space=vmem, size = 0x2000, scoped, tag = 'input window, operand 0, single buffered']
    #allocation3 [shape = 's32[1]{0}', space=sflag, size = 0x4, scoped, tag = 'scoped memory for tpu_custom_call.1']
    #allocation4 [shape = 's32[1]{0}', space=sflag, size = 0x4, scoped, tag = 'scoped memory for tpu_custom_call.1']
    #allocation5 [shape = 'u8[8192]{0}', space=vmem, size = 0x2000, scoped, tag = 'output window, operand 0, single buffered']
    %6 = vsyncpa [#allocation3], 0
    %7 = vsyncpa [#allocation4], 0
    // Predicated region
    $region2: #{tpu_custom_call.1} parent=1 // pred_check
      _
    $region3: #{tpu_custom_call.1} parent=1 // pred_check_branch
      %9 = sbr.rel (0) target = $region5
    $region4: #{tpu_custom_call.1} parent=1 // pred_region
      %s11 = ssub.s32 256, 256
      %12 = vsyncadd [#allocation3], %s11
      %s14 = sshll.u32 [#allocation2], 4
      %s15 = int_to_ptr.vmem [resolvable:$true] %s14
      %17 = dma.hbm_to_vmem [thread:$0]  %s0, 256, %s15, [#allocation3]
    $region5: #{tpu_custom_call.1} parent=1 // pred_fallthru
      _
    // Predicated region
    $region6: #{tpu_custom_call.1} parent=1 // pred_check
      _
    $region7: #{tpu_custom_call.1} parent=1 // pred_check_branch
      %19 = sbr.rel (0) target = $region9
    $region8: #{tpu_custom_call.1} parent=1 // pred_region
      %20 = dma.done [#allocation3], 256
    $region9: #{tpu_custom_call.1} parent=1 // pred_fallthru
      _
    %v21 = vld [vmem:[#allocation2] sm:$0xff]
    %v22 = vld [vmem:[#allocation2 + $0x8] sm:$0xff]
    %vm23 = vcmp.ge.f32.partialorder %v21, 0.0
    %vm24 = vcmp.ge.f32.partialorder %v22, 0.0
    %v25 = vsel %vm23, %v21, 0.0
    %v26 = vsel %vm24, %v22, 0.0
    %27 = vst [vmem:[#allocation5] sm:$0xff] %v25
    %28 = vst [vmem:[#allocation5 + $0x8] sm:$0xff] %v26
    // Predicated region
    $region10: #{tpu_custom_call.1} parent=1 // pred_check
      _
    $region11: #{tpu_custom_call.1} parent=1 // pred_check_branch
      %30 = sbr.rel (0) target = $region13
    $region12: #{tpu_custom_call.1} parent=1 // pred_region
      %s32 = ssub.s32 256, 256
      %33 = vsyncadd [#allocation4], %s32
      %s35 = sshll.u32 [#allocation5], 4
      %s36 = int_to_ptr.vmem [resolvable:$true] %s35
      %38 = dma.vmem_to_hbm [thread:$0]  %s36, 256, %s1, [#allocation4]
    $region13: #{tpu_custom_call.1} parent=1 // pred_fallthru
      _
    // Predicated region
    $region14: #{tpu_custom_call.1} parent=1 // pred_check
      _
    $region15: #{tpu_custom_call.1} parent=1 // pred_check_branch
      %40 = sbr.rel (0) target = $region17
    $region16: #{tpu_custom_call.1} parent=1 // pred_region
      %41 = dma.done [#allocation4], 256
    $region17: #{tpu_custom_call.1} parent=1 // pred_fallthru
      _
    %42 = vsyncpa [#allocation3], 1
    %43 = vsyncpa [#allocation4], 1

</llo_original>
